<compile_context>
chip_gen: v5e
topology: v5e:2x2
jax: 0.10.0
libtpu: 0.0.40
codegen_flags: <defaults>
</compile_context>

<pallas_src>
import jax
import jax.numpy as jnp
from jax.experimental import pallas as pl
from jax.experimental.pallas import tpu as pltpu


def mixing_kernel(x_ref, w1_ref, b1_ref, w2_ref, b2_ref, o_ref):
    # x_ref : (TB, IN)   batch tile (f32 or bf16)
    # w1_ref: (IN, H)    layer-1 weight, VMEM-resident (constant index_map)
    # b1_ref: (1,  H)    f32
    # w2_ref: (H,  1)    f32, VMEM-resident
    # b2_ref: (1,)       SMEM scalar
    # o_ref : (TB, 1)    f32
    # Layer 1 (MXU, native (M,K)x(K,N), f32 accumulate) + bias + ReLU (VPU, f32).
    h = jnp.dot(x_ref[...], w1_ref[...], preferred_element_type=jnp.float32)
    z = jnp.maximum(h + b1_ref[...], 0.0)
    # Layer 2: tiny (TB,H)x(H,1) matmul; result stays in its natural layout.
    y = jnp.dot(z, w2_ref[...], preferred_element_type=jnp.float32)
    o_ref[...] = (y + b2_ref[0]).astype(o_ref.dtype)


def _choose_tile(batch, tb_target):
    """Pick a batch-tile size.

    Goals: big enough to amortize the ~0.35 us per-grid-step cost, small enough
    that the double-buffered x tile fits default scoped VMEM on v5e/v6e/v7x
    (cap 2048 for in_dim=512), and - whenever possible - an exact divisor of the
    batch so no wrapper-side padding copy is needed.
    """
    tb = int(max(1, min(tb_target, 2048, batch)))
    if tb >= batch:
        # Whole batch in one tile: a full-extent block is exempt from the
        # (8,128) alignment rule, so any B works.  If the batch is large enough,
        # split in two so both v7x TensorCores get work.
        if batch >= 256 and batch % 16 == 0:
            return batch // 2
        return batch
    tb -= tb % 8                       # multi-tile path: sublane alignment
    tb = max(tb, 8)
    # Prefer an exact divisor of B within [tb/2, tb]: no padding, no ragged tile.
    for cand in range(tb, max(8, tb // 2) - 1, -8):
        if batch % cand == 0:
            return cand
    return tb                          # rare: caller pads the tail


def mixing_network_forward_batched(x, w1, b1, w2, b2, *, tb=1024):
    """QMIX mixer applied independently to B flattened samples.

    x : (B, in_dim) with in_dim = n_agents * 128 (f32 or bf16)
    w1: (in_dim, hidden)   b1: (hidden,)   w2: (hidden, 1)   b2: (1,)
    returns: (B,) float32
    """
    B, in_dim = x.shape
    hidden = w1.shape[1]

    # bf16 inputs stay bf16 (halves the dominant x HBM traffic; MXU is
    # bf16-native with f32 accumulation on all generations).  Everything else f32.
    compute_dtype = jnp.bfloat16 if x.dtype == jnp.bfloat16 else jnp.float32
    x = x.astype(compute_dtype)
    w1 = w1.astype(compute_dtype)                      # resident; one-time cast
    b1_row = b1.reshape(1, hidden).astype(jnp.float32)
    w2_col = w2.reshape(hidden, 1).astype(jnp.float32)
    b2_s = jnp.asarray(b2, jnp.float32).reshape(1)     # scalar -> SMEM

    tb = _choose_tile(B, tb)
    num_tiles = pl.cdiv(B, tb)
    Bp = num_tiles * tb
    if Bp != B:
        # Rare fallback: B has no tile-aligned divisor in [tb/2, tb].
        # TODO(synk): mask the ragged tail in-kernel to drop this full copy.
        x = jnp.pad(x, ((0, Bp - B), (0, 0)))

    itemsize = jnp.dtype(compute_dtype).itemsize
    cost = pl.CostEstimate(
        flops=2 * Bp * in_dim * hidden + 2 * Bp * hidden,
        transcendentals=0,
        bytes_accessed=(Bp * in_dim * itemsize            # x (dominant)
                        + in_dim * hidden * itemsize      # w1 (once)
                        + (2 * hidden + 1) * 4            # b1, w2, b2
                        + Bp * 4),                        # output
    )

    out = pl.pallas_call(
        mixing_kernel,
        out_shape=jax.ShapeDtypeStruct((Bp, 1), jnp.float32),
        grid=(num_tiles,),
        in_specs=[
            pl.BlockSpec((tb, in_dim), lambda i: (i, 0)),        # batch tile
            pl.BlockSpec((in_dim, hidden), lambda i: (0, 0)),    # resident W1
            pl.BlockSpec((1, hidden), lambda i: (0, 0)),         # resident b1
            pl.BlockSpec((hidden, 1), lambda i: (0, 0)),         # resident W2
            pl.BlockSpec(memory_space=pltpu.MemorySpace.SMEM),   # scalar b2
        ],
        out_specs=pl.BlockSpec((tb, 1), lambda i: (i, 0)),
        compiler_params=pltpu.CompilerParams(
            dimension_semantics=("parallel",)),
        cost_estimate=cost,
    )(x, w1, b1_row, w2_col, b2_s)

    return out[:B, 0]                                            # (B,)


def mixing_network_forward(agent_q_values, w1, b1, w2, b2):
    """PyTorch-equivalent forward: agent_q_values.view(-1) -> MLP -> shape (1,)."""
    x = agent_q_values.reshape(1, -1)
    return mixing_network_forward_batched(x, w1, b1, w2, b2)


def init_params(key, n_agents, hidden_dim):
    """Deterministic init matching nn.Linear's U(-1/sqrt(fan_in), 1/sqrt(fan_in))."""
    in_dim = n_agents * 128
    k1, k2, k3, k4 = jax.random.split(key, 4)
    bound1 = 1.0 / jnp.sqrt(in_dim)
    bound2 = 1.0 / jnp.sqrt(hidden_dim)
    w1 = jax.random.uniform(k1, (in_dim, hidden_dim), jnp.float32, -bound1, bound1)
    b1 = jax.random.uniform(k2, (hidden_dim,), jnp.float32, -bound1, bound1)
    w2 = jax.random.uniform(k3, (hidden_dim, 1), jnp.float32, -bound2, bound2)
    b2 = jax.random.uniform(k4, (1,), jnp.float32, -bound2, bound2)
    return w1, b1, w2, b2


if __name__ == "__main__":
    n_agents = 4
    hidden_dim = 32
    in_dim = n_agents * 128

    key = jax.random.PRNGKey(0)
    k_p, k_x, k_b = jax.random.split(key, 3)
    w1, b1, w2, b2 = init_params(k_p, n_agents, hidden_dim)

    # --- single-sample forward (exact PyTorch semantics: .view(-1) -> shape (1,)) ---
    agent_q_values = jax.random.normal(k_x, (n_agents, 128), jnp.float32)
    y1 = jax.block_until_ready(mixing_network_forward(agent_q_values, w1, b1, w2, b2))
    ref1 = jnp.maximum(agent_q_values.reshape(-1) @ w1 + b1, 0.0) @ w2 + b2
    assert y1.shape == (1,)
    assert jnp.allclose(y1, ref1, atol=1e-3, rtol=1e-3)

    # --- batched f32 forward (splits into 2 tiles of 128: multi-step grid,
    #     resident weights revisited across steps, no padding copy) ---
    B = 256
    xb = jax.random.normal(k_b, (B, in_dim), jnp.float32)
    refb = (jnp.maximum(xb @ w1 + b1, 0.0) @ w2 + b2)[:, 0]

    yb = jax.block_until_ready(mixing_network_forward_batched(xb, w1, b1, w2, b2))
    assert yb.shape == (B,)
    assert jnp.allclose(yb, refb, atol=1e-3, rtol=1e-3)

    # --- same batch with a caller-forced small tile (divisor path, 4 steps) ---
    yb2 = jax.block_until_ready(
        mixing_network_forward_batched(xb, w1, b1, w2, b2, tb=64))
    assert jnp.allclose(yb2, refb, atol=1e-3, rtol=1e-3)

    # --- bf16 input path (halves the dominant x HBM traffic; f32 accumulate) ---
    xh = xb[:200].astype(jnp.bfloat16)
    w1h = w1.astype(jnp.bfloat16)
    refh = (jnp.maximum(xh.astype(jnp.float32) @ w1h.astype(jnp.float32) + b1, 0.0)
            @ w2 + b2)[:, 0]
    yh = jax.block_until_ready(mixing_network_forward_batched(xh, w1, b1, w2, b2))
    assert yh.shape == (200,)
    assert jnp.allclose(yh, refh, atol=3e-2, rtol=3e-2)

    print("KERNEL_OK")
</pallas_src>

<mosaic_0001>
module attributes {stable_mosaic.version = 11 : i64} {
  func.func @mixing_kernel(%arg0: i32, %arg1: memref<1x512xf32, #tpu.memory_space<vmem>>, %arg2: memref<512x32xf32, #tpu.memory_space<vmem>>, %arg3: memref<1x32xf32, #tpu.memory_space<vmem>>, %arg4: memref<32x1xf32, #tpu.memory_space<vmem>>, %arg5: memref<1xf32, #tpu.memory_space<smem>>, %arg6: memref<1x1xf32, #tpu.memory_space<vmem>>) attributes {dimension_semantics = [#tpu.dimension_semantics<parallel>], iteration_bounds = array<i64: 1>, scalar_prefetch = 0 : i64, scratch_operands = 0 : i64, tpu.core_type = #tpu.core_type<tc>, window_params = [{transform_indices = @transform_0, window_bounds = array<i64: 1, 512>}, {pipeline_mode = #tpu.pipeline_mode<synchronous>, transform_indices = @transform_1, window_bounds = array<i64: 512, 32>}, {pipeline_mode = #tpu.pipeline_mode<synchronous>, transform_indices = @transform_2, window_bounds = array<i64: 1, 32>}, {pipeline_mode = #tpu.pipeline_mode<synchronous>, transform_indices = @transform_3, window_bounds = array<i64: 32, 1>}, {transform_indices = @transform_4, window_bounds = array<i64: 1>}, {transform_indices = @transform_5, window_bounds = array<i64: 1, 1>}]} {
    %c0 = arith.constant 0 : index
    %c0_0 = arith.constant 0 : index
    %0 = vector.load %arg1[%c0, %c0_0] : memref<1x512xf32, #tpu.memory_space<vmem>>, vector<1x512xf32>
    %c0_1 = arith.constant 0 : index
    %c0_2 = arith.constant 0 : index
    %1 = vector.load %arg2[%c0_1, %c0_2] : memref<512x32xf32, #tpu.memory_space<vmem>>, vector<512x32xf32>
    %cst = arith.constant dense<0.000000e+00> : vector<1x32xf32>
    %2 = tpu.matmul %0, %1, %cst {dimension_numbers = #tpu.dot_dimension_numbers<[1], [0], [0], [1], [0, 0, 1, 1], [], []>} : vector<1x512xf32>, vector<512x32xf32>, vector<1x32xf32> -> vector<1x32xf32>
    %c0_3 = arith.constant 0 : index
    %c0_4 = arith.constant 0 : index
    %3 = vector.load %arg3[%c0_3, %c0_4] : memref<1x32xf32, #tpu.memory_space<vmem>>, vector<1x32xf32>
    %4 = arith.addf %2, %3 : vector<1x32xf32>
    %cst_5 = arith.constant 0.000000e+00 : f32
    %5 = vector.broadcast %cst_5 : f32 to vector<1x32xf32>
    %6 = arith.maximumf %4, %5 : vector<1x32xf32>
    %c0_6 = arith.constant 0 : index
    %c0_7 = arith.constant 0 : index
    %7 = vector.load %arg4[%c0_6, %c0_7] : memref<32x1xf32, #tpu.memory_space<vmem>>, vector<32x1xf32>
    %cst_8 = arith.constant dense<0.000000e+00> : vector<1x1xf32>
    %8 = tpu.matmul %6, %7, %cst_8 {dimension_numbers = #tpu.dot_dimension_numbers<[1], [0], [0], [1], [0, 0, 1, 1], [], []>} : vector<1x32xf32>, vector<32x1xf32>, vector<1x1xf32> -> vector<1x1xf32>
    %c0_9 = arith.constant 0 : index
    %9 = memref.load %arg5[%c0_9] : memref<1xf32, #tpu.memory_space<smem>>
    %10 = vector.broadcast %9 : f32 to vector<1x1xf32>
    %11 = arith.addf %8, %10 : vector<1x1xf32>
    %c0_10 = arith.constant 0 : index
    %c0_11 = arith.constant 0 : index
    %12 = vector.load %arg6[%c0_10, %c0_11] : memref<1x1xf32, #tpu.memory_space<vmem>>, vector<1x1xf32>
    tpu.vector_store %arg6[%c0_10, %c0_11], %11 {strides = array<i32>} : memref<1x1xf32, #tpu.memory_space<vmem>>, vector<1x1xf32>,
    return
  }
  func.func @transform_0(%arg0: i32) -> (i32, i32) {
    %c0_i32 = arith.constant 0 : i32
    %c0_i32_0 = arith.constant 0 : i32
    return %arg0, %c0_i32 : i32, i32
  }
  func.func @transform_1(%arg0: i32) -> (i32, i32) {
    %c0_i32 = arith.constant 0 : i32
    %c0_i32_0 = arith.constant 0 : i32
    %c0_i32_1 = arith.constant 0 : i32
    return %c0_i32, %c0_i32_0 : i32, i32
  }
  func.func @transform_2(%arg0: i32) -> (i32, i32) {
    %c0_i32 = arith.constant 0 : i32
    %c0_i32_0 = arith.constant 0 : i32
    %c0_i32_1 = arith.constant 0 : i32
    return %c0_i32, %c0_i32_0 : i32, i32
  }
  func.func @transform_3(%arg0: i32) -> (i32, i32) {
    %c0_i32 = arith.constant 0 : i32
    %c0_i32_0 = arith.constant 0 : i32
    %c0_i32_1 = arith.constant 0 : i32
    return %c0_i32, %c0_i32_0 : i32, i32
  }
  func.func @transform_4(%arg0: i32) -> i32 {
    %c0_i32 = arith.constant 0 : i32
    %c0_i32_0 = arith.constant 0 : i32
    return %c0_i32 : i32
  }
  func.func @transform_5(%arg0: i32) -> (i32, i32) {
    %c0_i32 = arith.constant 0 : i32
    %c0_i32_0 = arith.constant 0 : i32
    return %arg0, %c0_i32 : i32, i32
  }
}

</mosaic_0001>

<llo_original>
// kernel: tpu_custom_call.1
$region0: #{tpu_custom_call.1}
  #allocation0 [shape = 'u32[]', space=smem, size = 0x4, offset = 0x4, fixed_abs, tag = 'smem constant byte address 0x4 - core index']
  #allocation1 [shape = 'u32[72,128]{1,0:T(1,128)}', space=vmem, size = 0x9000, scoped, tag = 'internal scratch']
  #allocation2 [shape = 'f32[1]{0:T(128)S(6)}', space=smem, size = 0x200, scoped, tag = 'scoped memory for tpu_custom_call.1']
  %s0 = inlined_call_operand.vmem [shape: f32[1,512], index: 0, kind: input, shape index: {}]
  %s1 = inlined_call_operand.vmem [shape: f32[512,32], index: 1, kind: input, shape index: {}]
  %s2 = inlined_call_operand.vmem [shape: f32[1,32], index: 2, kind: input, shape index: {}]
  %s3 = inlined_call_operand.vmem [shape: f32[32,1], index: 3, kind: input, shape index: {}]
  %s4 = inlined_call_operand.<no memory space> [shape: f32[1], index: 4, kind: input, shape index: {}]
  %s5 = inlined_call_operand.hbm [shape: f32[1,1], index: 5, kind: output, shape index: {}]
  %s6 = sld [smem:[#allocation0]]
  $region30: #{tpu_custom_call.1} parent=0
    _
  %s8 = ssub.s32 1, %s6
  %s9 = scalar_select 0, %s8, %s6
  %10 = sst [smem:[#allocation2]] %s4
  $region1: #{tpu_custom_call.1} parent=0
    #allocation3 [shape = 'u8[512]{0}', space=vmem, size = 0x400, scoped, tag = 'output window, operand 0, single buffered']
    #allocation4 [shape = 's32[1]{0}', space=sflag, size = 0x4, scoped, tag = 'scoped memory for tpu_custom_call.1']
    %11 = vsyncpa [#allocation4], 0
    // Predicated region
    $region2: #{tpu_custom_call.1} parent=1 // pred_check
      _
    $region3: #{tpu_custom_call.1} parent=1 // pred_check_branch
      %13 = sbr.rel (0) target = $region5
    $region4: #{tpu_custom_call.1} parent=1 // pred_region
      _
    $region5: #{tpu_custom_call.1} parent=1 // pred_fallthru
      _
    // Predicated region
    $region6: #{tpu_custom_call.1} parent=1 // pred_check
      _
    $region7: #{tpu_custom_call.1} parent=1 // pred_check_branch
      %15 = sbr.rel (0) target = $region9
    $region8: #{tpu_custom_call.1} parent=1 // pred_region
      _
    $region9: #{tpu_custom_call.1} parent=1 // pred_fallthru
      _
    // Predicated region
    $region10: #{tpu_custom_call.1} parent=1 // pred_check
      _
    $region11: #{tpu_custom_call.1} parent=1 // pred_check_branch
      %17 = sbr.rel (0) target = $region13
    $region12: #{tpu_custom_call.1} parent=1 // pred_region
      _
    $region13: #{tpu_custom_call.1} parent=1 // pred_fallthru
      _
    // Predicated region
    $region14: #{tpu_custom_call.1} parent=1 // pred_check
      _
    $region15: #{tpu_custom_call.1} parent=1 // pred_check_branch
      %19 = sbr.rel (0) target = $region17
    $region16: #{tpu_custom_call.1} parent=1 // pred_region
      _
    $region17: #{tpu_custom_call.1} parent=1 // pred_fallthru
      _
    // Predicated region
    $region18: #{tpu_custom_call.1} parent=1 // pred_check
      _
    $region19: #{tpu_custom_call.1} parent=1 // pred_check_branch
      %21 = sbr.rel (0) target = $region21
    $region20: #{tpu_custom_call.1} parent=1 // pred_region
      _
    $region21: #{tpu_custom_call.1} parent=1 // pred_fallthru
      _
    %v22 = vld [vmem:[%s0] sm:$0xf]
    %v23 = vld [vmem:[%s1] sm:$0xff]
    %v24 = vld [vmem:[%s1 + $0x8] sm:$0xff]
    %v25 = vld [vmem:[%s1 + $0x10] sm:$0xff]
    %v26 = vld [vmem:[%s1 + $0x18] sm:$0xff]
    %v27 = vld [vmem:[%s1 + $0x20] sm:$0xff]
    %v28 = vld [vmem:[%s1 + $0x28] sm:$0xff]
    %v29 = vld [vmem:[%s1 + $0x30] sm:$0xff]
    %v30 = vld [vmem:[%s1 + $0x38] sm:$0xff]
    %v31 = vld [vmem:[%s1 + $0x40] sm:$0xff]
    %v32 = vld [vmem:[%s1 + $0x48] sm:$0xff]
    %v33 = vld [vmem:[%s1 + $0x50] sm:$0xff]
    %v34 = vld [vmem:[%s1 + $0x58] sm:$0xff]
    %v35 = vld [vmem:[%s1 + $0x60] sm:$0xff]
    %v36 = vld [vmem:[%s1 + $0x68] sm:$0xff]
    %v37 = vld [vmem:[%s1 + $0x70] sm:$0xff]
    %v38 = vld [vmem:[%s1 + $0x78] sm:$0xff]
    %v39 = vld [vmem:[%s1 + $0x80] sm:$0xff]
    %v40 = vld [vmem:[%s1 + $0x88] sm:$0xff]
    %v41 = vld [vmem:[%s1 + $0x90] sm:$0xff]
    %v42 = vld [vmem:[%s1 + $0x98] sm:$0xff]
    %v43 = vld [vmem:[%s1 + $0xa0] sm:$0xff]
    %v44 = vld [vmem:[%s1 + $0xa8] sm:$0xff]
    %v45 = vld [vmem:[%s1 + $0xb0] sm:$0xff]
    %v46 = vld [vmem:[%s1 + $0xb8] sm:$0xff]
    %v47 = vld [vmem:[%s1 + $0xc0] sm:$0xff]
    %v48 = vld [vmem:[%s1 + $0xc8] sm:$0xff]
    %v49 = vld [vmem:[%s1 + $0xd0] sm:$0xff]
    %v50 = vld [vmem:[%s1 + $0xd8] sm:$0xff]
    %v51 = vld [vmem:[%s1 + $0xe0] sm:$0xff]
    %v52 = vld [vmem:[%s1 + $0xe8] sm:$0xff]
    %v53 = vld [vmem:[%s1 + $0xf0] sm:$0xff]
    %v54 = vld [vmem:[%s1 + $0xf8] sm:$0xff]
    %v55 = vld [vmem:[%s1 + $0x100] sm:$0xff]
    %v56 = vld [vmem:[%s1 + $0x108] sm:$0xff]
    %v57 = vld [vmem:[%s1 + $0x110] sm:$0xff]
    %v58 = vld [vmem:[%s1 + $0x118] sm:$0xff]
    %v59 = vld [vmem:[%s1 + $0x120] sm:$0xff]
    %v60 = vld [vmem:[%s1 + $0x128] sm:$0xff]
    %v61 = vld [vmem:[%s1 + $0x130] sm:$0xff]
    %v62 = vld [vmem:[%s1 + $0x138] sm:$0xff]
    %v63 = vld [vmem:[%s1 + $0x140] sm:$0xff]
    %v64 = vld [vmem:[%s1 + $0x148] sm:$0xff]
    %v65 = vld [vmem:[%s1 + $0x150] sm:$0xff]
    %v66 = vld [vmem:[%s1 + $0x158] sm:$0xff]
    %v67 = vld [vmem:[%s1 + $0x160] sm:$0xff]
    %v68 = vld [vmem:[%s1 + $0x168] sm:$0xff]
    %v69 = vld [vmem:[%s1 + $0x170] sm:$0xff]
    %v70 = vld [vmem:[%s1 + $0x178] sm:$0xff]
    %v71 = vld [vmem:[%s1 + $0x180] sm:$0xff]
    %v72 = vld [vmem:[%s1 + $0x188] sm:$0xff]
    %v73 = vld [vmem:[%s1 + $0x190] sm:$0xff]
    %v74 = vld [vmem:[%s1 + $0x198] sm:$0xff]
    %v75 = vld [vmem:[%s1 + $0x1a0] sm:$0xff]
    %v76 = vld [vmem:[%s1 + $0x1a8] sm:$0xff]
    %v77 = vld [vmem:[%s1 + $0x1b0] sm:$0xff]
    %v78 = vld [vmem:[%s1 + $0x1b8] sm:$0xff]
    %v79 = vld [vmem:[%s1 + $0x1c0] sm:$0xff]
    %v80 = vld [vmem:[%s1 + $0x1c8] sm:$0xff]
    %v81 = vld [vmem:[%s1 + $0x1d0] sm:$0xff]
    %v82 = vld [vmem:[%s1 + $0x1d8] sm:$0xff]
    %v83 = vld [vmem:[%s1 + $0x1e0] sm:$0xff]
    %v84 = vld [vmem:[%s1 + $0x1e8] sm:$0xff]
    %v85 = vld [vmem:[%s1 + $0x1f0] sm:$0xff]
    %v86 = vld [vmem:[%s1 + $0x1f8] sm:$0xff]
    %v87 = vld [vmem:[%s2] sm:$0x1]
    %v89 = vperm.slane %v22, 0
    %v90 = vperm.slane %v22, 1
    %v91 = vperm.slane %v22, 2
    %v92 = vperm.slane %v22, 3
    %97 = vmatpush.msra.mxu0 %v38
    %98 = vmatpush.msra.mxu0 %v37
    %99 = vmatpush.msra.mxu0 %v36
    %100 = vmatpush.msra.mxu0 %v35
    %101 = vmatpush.msra.mxu0 %v34
    %102 = vmatpush.msra.mxu0 %v33
    %103 = vmatpush.msra.mxu0 %v32
    %104 = vmatpush.msra.mxu0 %v31
    %105 = vmatpush.msra.mxu0 %v30
    %106 = vmatpush.msra.mxu0 %v29
    %107 = vmatpush.msra.mxu0 %v28
    %108 = vmatpush.msra.mxu0 %v27
    %109 = vmatpush.msra.mxu0 %v26
    %110 = vmatpush.msra.mxu0 %v25
    %111 = vmatpush.msra.mxu0 %v24
    %112 = vmatpush.msra.mxu0 %v23
    %113 = vmatmul.f32.gmra.mxu0 %v89
    %v114 = vpop.f32.mrf.mxu0
    %v115 = vadd.f32 %v87, %v114
    %116 = vdwg.mxu0
    %117 = vmatpush.msra.mxu0 %v54
    %118 = vmatpush.msra.mxu0 %v53
    %119 = vmatpush.msra.mxu0 %v52
    %120 = vmatpush.msra.mxu0 %v51
    %121 = vmatpush.msra.mxu0 %v50
    %122 = vmatpush.msra.mxu0 %v49
    %123 = vmatpush.msra.mxu0 %v48
    %124 = vmatpush.msra.mxu0 %v47
    %125 = vmatpush.msra.mxu0 %v46
    %126 = vmatpush.msra.mxu0 %v45
    %127 = vmatpush.msra.mxu0 %v44
    %128 = vmatpush.msra.mxu0 %v43
    %129 = vmatpush.msra.mxu0 %v42
    %130 = vmatpush.msra.mxu0 %v41
    %131 = vmatpush.msra.mxu0 %v40
    %132 = vmatpush.msra.mxu0 %v39
    %133 = vmatmul.f32.gmra.mxu0 %v90
    %v134 = vpop.f32.mrf.mxu0
    %v135 = vadd.f32 %v115, %v134
    %136 = vdwg.mxu0
    %137 = vmatpush.msra.mxu0 %v70
    %138 = vmatpush.msra.mxu0 %v69
    %139 = vmatpush.msra.mxu0 %v68
    %140 = vmatpush.msra.mxu0 %v67
    %141 = vmatpush.msra.mxu0 %v66
    %142 = vmatpush.msra.mxu0 %v65
    %143 = vmatpush.msra.mxu0 %v64
    %144 = vmatpush.msra.mxu0 %v63
    %145 = vmatpush.msra.mxu0 %v62
    %146 = vmatpush.msra.mxu0 %v61
    %147 = vmatpush.msra.mxu0 %v60
    %148 = vmatpush.msra.mxu0 %v59
    %149 = vmatpush.msra.mxu0 %v58
    %150 = vmatpush.msra.mxu0 %v57
    %151 = vmatpush.msra.mxu0 %v56
    %152 = vmatpush.msra.mxu0 %v55
    %153 = vmatmul.f32.gmra.mxu0 %v91
    %v154 = vpop.f32.mrf.mxu0
    %v155 = vadd.f32 %v135, %v154
    %156 = vdwg.mxu0
    %157 = vmatpush.msra.mxu0 %v86
    %158 = vmatpush.msra.mxu0 %v85
    %159 = vmatpush.msra.mxu0 %v84
    %160 = vmatpush.msra.mxu0 %v83
    %161 = vmatpush.msra.mxu0 %v82
    %162 = vmatpush.msra.mxu0 %v81
    %163 = vmatpush.msra.mxu0 %v80
    %164 = vmatpush.msra.mxu0 %v79
    %165 = vmatpush.msra.mxu0 %v78
    %166 = vmatpush.msra.mxu0 %v77
    %167 = vmatpush.msra.mxu0 %v76
    %168 = vmatpush.msra.mxu0 %v75
    %169 = vmatpush.msra.mxu0 %v74
    %170 = vmatpush.msra.mxu0 %v73
    %171 = vmatpush.msra.mxu0 %v72
    %172 = vmatpush.msra.mxu0 %v71
    %173 = vmatmul.f32.gmra.mxu0 %v92
    %v174 = vpop.f32.mrf.mxu0
    %v175 = vadd.f32 %v155, %v174
    %176 = vdwg.mxu0
    %v177 = vmax.f32 %v175, 0.0
    %v178 = vld [vmem:[%s3] sm:$0xff]
    %v179 = vld [vmem:[%s3 + $0x8] sm:$0xff]
    %v180 = vld [vmem:[%s3 + $0x10] sm:$0xff]
    %v181 = vld [vmem:[%s3 + $0x18] sm:$0xff]
    %s182 = sld [smem:[#allocation2]]
    %v183 = vstv %s182
    %vm184 = vcmask 261120
    %v186 = vsel %vm184, %v177, 0
    %188 = vmatpush.msra.mxu0 0.0
    %189 = vmatpush.msra.mxu0 0.0
    %190 = vmatpush.msra.mxu0 0.0
    %191 = vmatpush.msra.mxu0 0.0
    %192 = vmatpush.msra.mxu0 0.0
    %193 = vmatpush.msra.mxu0 0.0
    %194 = vmatpush.msra.mxu0 0.0
    %195 = vmatpush.msra.mxu0 0.0
    %196 = vmatpush.msra.mxu0 0.0
    %197 = vmatpush.msra.mxu0 0.0
    %198 = vmatpush.msra.mxu0 0.0
    %199 = vmatpush.msra.mxu0 0.0
    %200 = vmatpush.msra.mxu0 %v181
    %201 = vmatpush.msra.mxu0 %v180
    %202 = vmatpush.msra.mxu0 %v179
    %203 = vmatpush.msra.mxu0 %v178
    %204 = vmatmul.f32.gmra.mxu0 %v186
    %v205 = vpop.f32.mrf.mxu0
    %v206 = vadd.f32 %v183, %v205
    %207 = vdwg.mxu0
    %vm208 = vcmask 0
    %209 = vst.msk [vmem:[#allocation3] sm:$0x1] %vm208, %v206
    // Predicated region
    $region22: #{tpu_custom_call.1} parent=1 // pred_check
      _
    $region23: #{tpu_custom_call.1} parent=1 // pred_check_branch
      %211 = sbr.rel (0) target = $region25
    $region24: #{tpu_custom_call.1} parent=1 // pred_region
      %213 = vsyncadd [#allocation4], 0
      %s215 = sshll.u32 [#allocation3], 4
      %s216 = int_to_ptr.vmem [resolvable:$true] %s215
      %s217 = sshll.u32 %s5, 4
      %s218 = int_to_ptr.hbm [resolvable:$true] %s217
      %220 = dma.vmem_to_hbm [thread:$0]  %s216, 16, %s218, [#allocation4]
    $region25: #{tpu_custom_call.1} parent=1 // pred_fallthru
      _
    // Predicated region
    $region26: #{tpu_custom_call.1} parent=1 // pred_check
      _
    $region27: #{tpu_custom_call.1} parent=1 // pred_check_branch
      %222 = sbr.rel (0) target = $region29
    $region28: #{tpu_custom_call.1} parent=1 // pred_region
      %224 = dma.done [#allocation4], 16
    $region29: #{tpu_custom_call.1} parent=1 // pred_fallthru
      _
    %225 = vsyncpa [#allocation4], 1

</llo_original>
